<compile_context>
chip_gen: v6e
topology: v6e:2x2x1
jax: 0.10.0
libtpu: 0.0.40
codegen_flags: <defaults>
</compile_context>

<pallas_src>
import functools

import jax
import jax.numpy as jnp
import numpy as np
from jax import lax
from jax.experimental import pallas as pl
from jax.experimental.pallas import tpu as pltpu


_TM_TARGET = 512           # v7x-safe M tile; ~85% of HBM roofline measured on v6e
_VMEM_FLOOR = 32 * 2**20   # lift v5e's 16 MiB scoped default
_VMEM_CEIL = 48 * 2**20    # stay well inside v7x's 64 MiB physical VMEM per TC


def _round_up(x, m):
    return ((x + m - 1) // m) * m


def _ew_tile(m_pad, cap=2048):
    """Largest multiple of 16 that divides m_pad and is <= cap.

    m_pad is a multiple of 16 by construction, so this always succeeds.
    """
    t = (min(m_pad, cap) // 16) * 16
    while t > 16 and m_pad % t:
        t -= 16
    return t


def _vmem_limit(*buffer_bytes):
    """Conservative scoped-VMEM request: double-buffer everything + slack."""
    est = 2 * sum(buffer_bytes) + 4 * 2**20
    return int(min(_VMEM_CEIL, max(_VMEM_FLOOR, est)))


def _pad_rows(A):
    """Pick the M tile and zero-pad A's rows to a multiple of it."""
    M = A.shape[0]
    tm = min(_TM_TARGET, _round_up(M, 16))
    Mp = _round_up(M, tm)
    if Mp != M:
        A = jnp.pad(A, ((0, Mp - M), (0, 0)))
    return A, tm, Mp


# ----------------------------------------------------------------------------
# Pallas kernels
# ----------------------------------------------------------------------------
def _mm_act_kernel(a_ref, b_ref, bias_ref, o_ref, *, activation):
    """(tm, K) @ (K, Cout) on the MXU (bf16 in, f32 acc) + bias + activation."""
    y = jnp.dot(a_ref[...], b_ref[...], preferred_element_type=jnp.float32)
    y = y + bias_ref[...]                                   # (tm, Cout) + (1, Cout)
    if activation == "leaky":
        y = jnp.where(y >= 0.0, y, 0.2 * y)
    elif activation == "sigmoid":
        y = 1.0 / (1.0 + jnp.exp(-y))
    o_ref[...] = y.astype(o_ref.dtype)


def _mm_stats_kernel(a_ref, b_ref, bias_ref, y_ref, stats_ref, *, tm, true_m):
    """Matmul + bias; writes bf16 pre-BN activation and per-tile (sum, sumsq).

    Statistics are taken from the f32 accumulator (exact); rows that only exist
    because M was padded up to the tile size are masked out of the partials.
    """
    y = jnp.dot(a_ref[...], b_ref[...], preferred_element_type=jnp.float32)
    y = y + bias_ref[...]
    y_ref[...] = y.astype(y_ref.dtype)                       # bf16 pre-BN output
    if true_m % tm:                                          # padded rows exist
        row = pl.program_id(0) * tm + lax.broadcasted_iota(jnp.int32, (tm, 1), 0)
        y = jnp.where(row < true_m, y, 0.0)
    stats_ref[...] = jnp.zeros_like(stats_ref)
    stats_ref[0:1, :] = jnp.sum(y, axis=0, keepdims=True)
    stats_ref[1:2, :] = jnp.sum(y * y, axis=0, keepdims=True)


def _scale_shift_lrelu_kernel(y_ref, scale_ref, shift_ref, o_ref):
    """Elementwise folded BatchNorm (y*scale + shift) + LeakyReLU(0.2)."""
    y = y_ref[...].astype(jnp.float32) * scale_ref[...] + shift_ref[...]
    o_ref[...] = jnp.where(y >= 0.0, y, 0.2 * y).astype(o_ref.dtype)


# ----------------------------------------------------------------------------
# pallas_call wrappers
# ----------------------------------------------------------------------------
def _conv_matmul_act(A, B, bias, *, activation, out_dtype):
    """A: (M, K) bf16 patches, B: (K, Cout) bf16 weights, bias: (1, Cout) f32."""
    M, K = A.shape
    Cout = B.shape[1]
    A, tm, Mp = _pad_rows(A)
    out_isz = jnp.dtype(out_dtype).itemsize
    return pl.pallas_call(
        functools.partial(_mm_act_kernel, activation=activation),
        out_shape=jax.ShapeDtypeStruct((Mp, Cout), out_dtype),
        grid_spec=pltpu.PrefetchScalarGridSpec(
            num_scalar_prefetch=0,
            grid=(Mp // tm,),
            in_specs=[
                pl.BlockSpec((tm, K), lambda i: (i, 0)),      # A streams over M
                pl.BlockSpec((K, Cout), lambda i: (0, 0)),    # weights resident
                pl.BlockSpec((1, Cout), lambda i: (0, 0)),    # bias resident
            ],
            out_specs=pl.BlockSpec((tm, Cout), lambda i: (i, 0)),
        ),
        compiler_params=pltpu.CompilerParams(
            dimension_semantics=("parallel",),
            vmem_limit_bytes=_vmem_limit(tm * K * 2, K * Cout * 2,
                                         tm * Cout * out_isz)),
    )(A, B, bias)


def _conv_matmul_stats(A, B, bias):
    """Matmul + bias: bf16 pre-BN activations + per-M-tile partial statistics."""
    M, K = A.shape
    Cout = B.shape[1]
    A, tm, Mp = _pad_rows(A)
    n_mt = Mp // tm
    return pl.pallas_call(
        functools.partial(_mm_stats_kernel, tm=tm, true_m=M),
        out_shape=(
            jax.ShapeDtypeStruct((Mp, Cout), jnp.bfloat16),       # pre-BN y
            jax.ShapeDtypeStruct((n_mt * 8, Cout), jnp.float32),  # partial stats
        ),
        grid_spec=pltpu.PrefetchScalarGridSpec(
            num_scalar_prefetch=0,
            grid=(n_mt,),
            in_specs=[
                pl.BlockSpec((tm, K), lambda i: (i, 0)),
                pl.BlockSpec((K, Cout), lambda i: (0, 0)),
                pl.BlockSpec((1, Cout), lambda i: (0, 0)),
            ],
            out_specs=[
                pl.BlockSpec((tm, Cout), lambda i: (i, 0)),
                pl.BlockSpec((8, Cout), lambda i: (i, 0)),
            ],
        ),
        compiler_params=pltpu.CompilerParams(
            dimension_semantics=("parallel",),
            vmem_limit_bytes=_vmem_limit(tm * K * 2, K * Cout * 2,
                                         tm * Cout * 2)),
    )(A, B, bias)


def _bn_act(y, scale, shift, *, out_dtype):
    """Elementwise folded-BN + LeakyReLU over the (Mp, C) bf16 pre-activation."""
    Mp, C = y.shape
    tm = _ew_tile(Mp)
    return pl.pallas_call(
        _scale_shift_lrelu_kernel,
        out_shape=jax.ShapeDtypeStruct((Mp, C), out_dtype),
        grid_spec=pltpu.PrefetchScalarGridSpec(
            num_scalar_prefetch=0,
            grid=(Mp // tm,),
            in_specs=[
                pl.BlockSpec((tm, C), lambda i: (i, 0)),
                pl.BlockSpec((1, C), lambda i: (0, 0)),
                pl.BlockSpec((1, C), lambda i: (0, 0)),
            ],
            out_specs=pl.BlockSpec((tm, C), lambda i: (i, 0)),
        ),
        compiler_params=pltpu.CompilerParams(
            dimension_semantics=("parallel",),
            vmem_limit_bytes=_vmem_limit(tm * C * 2, tm * C * 2)),
    )(y, scale, shift)


# ----------------------------------------------------------------------------
# JAX glue: padding + im2col (layout plumbing only)
# ----------------------------------------------------------------------------
def _im2col(x_nhwc, k, stride):
    N, Hp, Wp, C = x_nhwc.shape
    Ho = (Hp - k) // stride + 1
    Wo = (Wp - k) // stride + 1
    cols = []
    for i in range(k):
        for j in range(k):
            cols.append(
                lax.slice(
                    x_nhwc,
                    (0, i, j, 0),
                    (N, i + (Ho - 1) * stride + 1, j + (Wo - 1) * stride + 1, C),
                    (1, stride, stride, 1),
                )
            )
    p = jnp.stack(cols, axis=3)                          # (N, Ho, Wo, k*k, C)
    return p.reshape(N * Ho * Wo, k * k * C), (N, Ho, Wo)


def _conv_block(x_nhwc, p, *, out_dtype):
    w = p["w"]
    k, _, cin, cout = w.shape

    # Pad Cin up to a multiple of 8 so K = k*k*Cin is a multiple of 128
    # (layer 1: 6 -> 8, K = 96 -> 128).  Zero channels x zero weights == 0.
    cin_pad = (-cin) % 8
    if cin_pad:
        x_nhwc = jnp.pad(x_nhwc, ((0, 0), (0, 0), (0, 0), (0, cin_pad)))
        w = jnp.pad(w, ((0, 0), (0, 0), (0, cin_pad), (0, 0)))

    # Pad tiny Cout (final 1-channel conv) up to 128 so output stores are
    # lane-dense; the padded channels are sliced off below.
    bias = p["b"]
    cout_p = cout
    if cout < 64:
        cout_p = 128
        w = jnp.pad(w, ((0, 0), (0, 0), (0, 0), (0, cout_p - cout)))
        bias = jnp.pad(bias, ((0, cout_p - cout),))

    xpad = jnp.pad(x_nhwc, ((0, 0), (1, 1), (1, 1), (0, 0)))        # padding=1
    A, (N, Ho, Wo) = _im2col(xpad, k, p["stride"])
    M = A.shape[0]
    A = A.astype(jnp.bfloat16)
    B = w.reshape(A.shape[1], cout_p).astype(jnp.bfloat16)          # (kh,kw,cin) rows
    bias = bias.reshape(1, cout_p).astype(jnp.float32)

    if p["use_bn"]:
        y, stats = _conv_matmul_stats(A, B, bias)
        # Reduce the per-M-tile partial statistics (tiny: n_tiles x Cout) and
        # fold mean/var/gamma/beta into a single per-channel scale/shift pair.
        st = stats.reshape(-1, 8, cout_p)
        sums = jnp.sum(st[:, 0, :], axis=0)
        sqs = jnp.sum(st[:, 1, :], axis=0)
        inv_n = 1.0 / float(M)
        mean = sums * inv_n
        var = sqs * inv_n - mean * mean                  # biased variance
        scale = p["gamma"].astype(jnp.float32) * lax.rsqrt(var + 1e-5)
        shift = p["beta"].astype(jnp.float32) - mean * scale
        out = _bn_act(y, scale.reshape(1, -1), shift.reshape(1, -1),
                      out_dtype=out_dtype)
    else:
        out = _conv_matmul_act(A, B, bias,
                               activation=p["act"], out_dtype=out_dtype)

    out = out[:M, :cout]                                 # drop M / Cout padding
    return out.reshape(N, Ho, Wo, cout)


def patchgan_forward(img_A_nchw, img_B_nchw, params):
    x = jnp.concatenate([img_A_nchw, img_B_nchw], axis=1)           # cat channels
    x = jnp.transpose(x, (0, 2, 3, 1)).astype(jnp.bfloat16)         # NCHW -> NHWC
    for li, p in enumerate(params):
        last = li == len(params) - 1
        x = _conv_block(x, p, out_dtype=jnp.float32 if last else jnp.bfloat16)
    return jnp.transpose(x, (0, 3, 1, 2)).astype(jnp.float32)       # NHWC -> NCHW


# ----------------------------------------------------------------------------
# Deterministic parameter initialization (shapes from the nn.Module __init__)
# ----------------------------------------------------------------------------
def init_params(key, in_channels=3):
    cfg = [
        (in_channels * 2, 64, False, "leaky", 2),
        (64, 128, True, "leaky", 2),
        (128, 256, True, "leaky", 2),
        (256, 512, True, "leaky", 2),
        (512, 1, False, "sigmoid", 1),
    ]
    params = []
    for cin, cout, use_bn, act, stride in cfg:
        key, kw, kb, kg, kbe = jax.random.split(key, 5)
        params.append(dict(
            w=0.05 * jax.random.normal(kw, (4, 4, cin, cout), jnp.float32),   # HWIO
            b=0.05 * jax.random.normal(kb, (cout,), jnp.float32),
            gamma=1.0 + 0.1 * jax.random.normal(kg, (cout,), jnp.float32),
            beta=0.1 * jax.random.normal(kbe, (cout,), jnp.float32),
            use_bn=use_bn, act=act, stride=stride,
        ))
    return params


# ----------------------------------------------------------------------------
# Pure-JAX f32 reference (lax.conv) for a correctness sanity check
# ----------------------------------------------------------------------------
def ref_forward(img_A_nchw, img_B_nchw, params):
    x = jnp.concatenate([img_A_nchw, img_B_nchw], axis=1)
    x = jnp.transpose(x, (0, 2, 3, 1))
    for p in params:
        y = lax.conv_general_dilated(
            x, p["w"], (p["stride"], p["stride"]), [(1, 1), (1, 1)],
            dimension_numbers=("NHWC", "HWIO", "NHWC"),
            precision=lax.Precision.HIGHEST,
        ) + p["b"].reshape(1, 1, 1, -1)
        if p["use_bn"]:
            m = jnp.mean(y, axis=(0, 1, 2), keepdims=True)
            v = jnp.mean(jnp.square(y - m), axis=(0, 1, 2), keepdims=True)
            y = (y - m) / jnp.sqrt(v + 1e-5)
            y = y * p["gamma"].reshape(1, 1, 1, -1) + p["beta"].reshape(1, 1, 1, -1)
        if p["act"] == "leaky":
            y = jnp.where(y >= 0.0, y, 0.2 * y)
        elif p["act"] == "sigmoid":
            y = jax.nn.sigmoid(y)
        x = y
    return jnp.transpose(x, (0, 3, 1, 2))


if __name__ == "__main__":
    key = jax.random.PRNGKey(0)
    k_par, k_a, k_b = jax.random.split(key, 3)

    # Small but valid shapes: 4 stride-2 convs + final k=4/p=1 conv need H >= 32.
    N, C, H = 2, 3, 32
    img_A = jax.random.normal(k_a, (N, C, H, H), jnp.float32)
    img_B = jax.random.normal(k_b, (N, C, H, H), jnp.float32)

    params = init_params(k_par, in_channels=C)

    out = jax.block_until_ready(patchgan_forward(img_A, img_B, params))
    assert out.shape == (N, 1, 1, 1), out.shape
    assert bool(jnp.all(jnp.isfinite(out)))

    # Reference is pure-f32 / HIGHEST precision; the Pallas path runs bf16
    # matmuls with f32 accumulation and bf16 intermediate activations, so a
    # modest tolerance is used.
    ref = jax.block_until_ready(ref_forward(img_A, img_B, params))
    np.testing.assert_allclose(np.asarray(out), np.asarray(ref),
                               rtol=5e-2, atol=5e-2)

    print("KERNEL_OK")
</pallas_src>

<mosaic_0001>
module attributes {stable_mosaic.version = 11 : i64} {
  func.func @_mm_act_kernel(%arg0: i32, %arg1: memref<512x128xbf16, #tpu.memory_space<vmem>>, %arg2: memref<128x64xbf16, #tpu.memory_space<vmem>>, %arg3: memref<1x64xf32, #tpu.memory_space<vmem>>, %arg4: memref<512x64xbf16, #tpu.memory_space<vmem>>) attributes {dimension_semantics = [#tpu.dimension_semantics<parallel>], iteration_bounds = array<i64: 1>, scalar_prefetch = 0 : i64, scratch_operands = 0 : i64, tpu.core_type = #tpu.core_type<tc>, window_params = [{transform_indices = @transform_0, window_bounds = array<i64: 512, 128>}, {pipeline_mode = #tpu.pipeline_mode<synchronous>, transform_indices = @transform_1, window_bounds = array<i64: 128, 64>}, {pipeline_mode = #tpu.pipeline_mode<synchronous>, transform_indices = @transform_2, window_bounds = array<i64: 1, 64>}, {transform_indices = @transform_3, window_bounds = array<i64: 512, 64>}]} {
    %c0 = arith.constant 0 : index
    %c0_0 = arith.constant 0 : index
    %0 = vector.load %arg1[%c0, %c0_0] : memref<512x128xbf16, #tpu.memory_space<vmem>>, vector<512x128xbf16>
    %c0_1 = arith.constant 0 : index
    %c0_2 = arith.constant 0 : index
    %1 = vector.load %arg2[%c0_1, %c0_2] : memref<128x64xbf16, #tpu.memory_space<vmem>>, vector<128x64xbf16>
    %cst = arith.constant dense<0.000000e+00> : vector<512x64xf32>
    %2 = tpu.matmul %0, %1, %cst {dimension_numbers = #tpu.dot_dimension_numbers<[1], [0], [0], [1], [0, 0, 1, 1], [], []>} : vector<512x128xbf16>, vector<128x64xbf16>, vector<512x64xf32> -> vector<512x64xf32>
    %c0_3 = arith.constant 0 : index
    %c0_4 = arith.constant 0 : index
    %3 = vector.load %arg3[%c0_3, %c0_4] : memref<1x64xf32, #tpu.memory_space<vmem>>, vector<1x64xf32>
    %4 = vector.broadcast %3 : vector<1x64xf32> to vector<512x64xf32>
    %5 = arith.addf %2, %4 : vector<512x64xf32>
    %cst_5 = arith.constant 0.000000e+00 : f32
    %6 = vector.broadcast %cst_5 : f32 to vector<512x64xf32>
    %7 = arith.cmpf oge, %5, %6 : vector<512x64xf32>
    %cst_6 = arith.constant 2.000000e-01 : f32
    %8 = vector.broadcast %cst_6 : f32 to vector<512x64xf32>
    %9 = arith.mulf %8, %5 : vector<512x64xf32>
    %10 = arith.select %7, %5, %9 : vector<512x64xi1>, vector<512x64xf32>
    %11 = arith.truncf %10 : vector<512x64xf32> to vector<512x64xbf16>
    %c0_7 = arith.constant 0 : index
    %c0_8 = arith.constant 0 : index
    %12 = vector.load %arg4[%c0_7, %c0_8] : memref<512x64xbf16, #tpu.memory_space<vmem>>, vector<512x64xbf16>
    tpu.vector_store %arg4[%c0_7, %c0_8], %11 {strides = array<i32>} : memref<512x64xbf16, #tpu.memory_space<vmem>>, vector<512x64xbf16>,
    return
  }
  func.func @transform_0(%arg0: i32) -> (i32, i32) {
    %c0_i32 = arith.constant 0 : i32
    %c0_i32_0 = arith.constant 0 : i32
    return %arg0, %c0_i32 : i32, i32
  }
  func.func @transform_1(%arg0: i32) -> (i32, i32) {
    %c0_i32 = arith.constant 0 : i32
    %c0_i32_0 = arith.constant 0 : i32
    %c0_i32_1 = arith.constant 0 : i32
    return %c0_i32, %c0_i32_0 : i32, i32
  }
  func.func @transform_2(%arg0: i32) -> (i32, i32) {
    %c0_i32 = arith.constant 0 : i32
    %c0_i32_0 = arith.constant 0 : i32
    %c0_i32_1 = arith.constant 0 : i32
    return %c0_i32, %c0_i32_0 : i32, i32
  }
  func.func @transform_3(%arg0: i32) -> (i32, i32) {
    %c0_i32 = arith.constant 0 : i32
    %c0_i32_0 = arith.constant 0 : i32
    return %arg0, %c0_i32 : i32, i32
  }
}

</mosaic_0001>

<llo_original>
// kernel: tpu_custom_call.1
$region0: #{tpu_custom_call.1}
  #allocation0 [shape = 'u32[]', space=smem, size = 0x4, offset = 0x4, fixed_abs, tag = 'smem constant byte address 0x4 - core index']
  #allocation1 [shape = 'u32[144,128]{1,0:T(1,128)}', space=vmem, size = 0x12000, scoped, tag = 'internal scratch']
  %s0 = inlined_call_operand.hbm [shape: bf16[512,128], index: 0, kind: input, shape index: {}]
  %s1 = inlined_call_operand.vmem [shape: bf16[128,64], index: 1, kind: input, shape index: {}]
  %s2 = inlined_call_operand.vmem [shape: f32[1,64], index: 2, kind: input, shape index: {}]
  %s3 = inlined_call_operand.vmem [shape: bf16[512,64], index: 3, kind: output, shape index: {}]
  %s4 = sld [smem:[#allocation0]]
  $region26: #{tpu_custom_call.1} parent=0
    _
  %s6 = ssub.s32 1, %s4
  %s7 = scalar_select 0, %s6, %s4
  $region1: #{tpu_custom_call.1} parent=0
    #allocation2 [shape = 'u8[131072]{0}', space=vmem, size = 0x20000, scoped, tag = 'input window, operand 0, single buffered']
    #allocation3 [shape = 's32[1]{0}', space=sflag, size = 0x4, scoped, tag = 'scoped memory for tpu_custom_call.1']
    %8 = vsyncpa [#allocation3], 0
    // Predicated region
    $region2: #{tpu_custom_call.1} parent=1 // pred_check
      _
    $region3: #{tpu_custom_call.1} parent=1 // pred_check_branch
      %10 = sbr.rel (0) target = $region5
    $region4: #{tpu_custom_call.1} parent=1 // pred_region
      %s12 = ssub.s32 4096, 4096
      %13 = vsyncadd [#allocation3], %s12
      %s14 = sshll.u32 [#allocation2], 4
      %s15 = int_to_ptr.vmem [resolvable:$true] %s14
      %20 = dma.hbm_to_vmem [thread:$0]  %s0, 4096, %s15, [#allocation3], 64, 64, 4
    $region5: #{tpu_custom_call.1} parent=1 // pred_fallthru
      _
    // Predicated region
    $region6: #{tpu_custom_call.1} parent=1 // pred_check
      _
    $region7: #{tpu_custom_call.1} parent=1 // pred_check_branch
      %22 = sbr.rel (0) target = $region9
    $region8: #{tpu_custom_call.1} parent=1 // pred_region
      _
    $region9: #{tpu_custom_call.1} parent=1 // pred_fallthru
      _
    // Predicated region
    $region10: #{tpu_custom_call.1} parent=1 // pred_check
      _
    $region11: #{tpu_custom_call.1} parent=1 // pred_check_branch
      %24 = sbr.rel (0) target = $region13
    $region12: #{tpu_custom_call.1} parent=1 // pred_region
      _
    $region13: #{tpu_custom_call.1} parent=1 // pred_fallthru
      _
    // Predicated region
    $region14: #{tpu_custom_call.1} parent=1 // pred_check
      _
    $region15: #{tpu_custom_call.1} parent=1 // pred_check_branch
      %26 = sbr.rel (0) target = $region17
    $region16: #{tpu_custom_call.1} parent=1 // pred_region
      %27 = dma.done [#allocation3], 4096
    $region17: #{tpu_custom_call.1} parent=1 // pred_fallthru
      _
    %v29 = vld [vmem:[#allocation2] sm:$0xf]
    %v30 = vld [vmem:[#allocation2 + $0x4] sm:$0xf]
    %v31 = vld [vmem:[#allocation2 + $0x8] sm:$0xf]
    %v32 = vld [vmem:[#allocation2 + $0xc] sm:$0xf]
    %v33 = vld [vmem:[#allocation2 + $0x10] sm:$0xf]
    %v34 = vld [vmem:[#allocation2 + $0x14] sm:$0xf]
    %v35 = vld [vmem:[#allocation2 + $0x18] sm:$0xf]
    %v36 = vld [vmem:[#allocation2 + $0x1c] sm:$0xf]
    %v37 = vld [vmem:[#allocation2 + $0x20] sm:$0xf]
    %v38 = vld [vmem:[#allocation2 + $0x24] sm:$0xf]
    %v39 = vld [vmem:[#allocation2 + $0x28] sm:$0xf]
    %v40 = vld [vmem:[#allocation2 + $0x2c] sm:$0xf]
    %v41 = vld [vmem:[#allocation2 + $0x30] sm:$0xf]
    %v42 = vld [vmem:[#allocation2 + $0x34] sm:$0xf]
    %v43 = vld [vmem:[#allocation2 + $0x38] sm:$0xf]
    %v44 = vld [vmem:[#allocation2 + $0x3c] sm:$0xf]
    %v45 = vld [vmem:[#allocation2 + $0x40] sm:$0xf]
    %v46 = vld [vmem:[#allocation2 + $0x44] sm:$0xf]
    %v47 = vld [vmem:[#allocation2 + $0x48] sm:$0xf]
    %v48 = vld [vmem:[#allocation2 + $0x4c] sm:$0xf]
    %v49 = vld [vmem:[#allocation2 + $0x50] sm:$0xf]
    %v50 = vld [vmem:[#allocation2 + $0x54] sm:$0xf]
    %v51 = vld [vmem:[#allocation2 + $0x58] sm:$0xf]
    %v52 = vld [vmem:[#allocation2 + $0x5c] sm:$0xf]
    %v53 = vld [vmem:[#allocation2 + $0x60] sm:$0xf]
    %v54 = vld [vmem:[#allocation2 + $0x64] sm:$0xf]
    %v55 = vld [vmem:[#allocation2 + $0x68] sm:$0xf]
    %v56 = vld [vmem:[#allocation2 + $0x6c] sm:$0xf]
    %v57 = vld [vmem:[#allocation2 + $0x70] sm:$0xf]
    %v58 = vld [vmem:[#allocation2 + $0x74] sm:$0xf]
    %v59 = vld [vmem:[#allocation2 + $0x78] sm:$0xf]
    %v60 = vld [vmem:[#allocation2 + $0x7c] sm:$0xf]
    %v61 = vld [vmem:[#allocation2 + $0x80] sm:$0xf]
    %v62 = vld [vmem:[#allocation2 + $0x84] sm:$0xf]
    %v63 = vld [vmem:[#allocation2 + $0x88] sm:$0xf]
    %v64 = vld [vmem:[#allocation2 + $0x8c] sm:$0xf]
    %v65 = vld [vmem:[#allocation2 + $0x90] sm:$0xf]
    %v66 = vld [vmem:[#allocation2 + $0x94] sm:$0xf]
    %v67 = vld [vmem:[#allocation2 + $0x98] sm:$0xf]
    %v68 = vld [vmem:[#allocation2 + $0x9c] sm:$0xf]
    %v69 = vld [vmem:[#allocation2 + $0xa0] sm:$0xf]
    %v70 = vld [vmem:[#allocation2 + $0xa4] sm:$0xf]
    %v71 = vld [vmem:[#allocation2 + $0xa8] sm:$0xf]
    %v72 = vld [vmem:[#allocation2 + $0xac] sm:$0xf]
    %v73 = vld [vmem:[#allocation2 + $0xb0] sm:$0xf]
    %v74 = vld [vmem:[#allocation2 + $0xb4] sm:$0xf]
    %v75 = vld [vmem:[#allocation2 + $0xb8] sm:$0xf]
    %v76 = vld [vmem:[#allocation2 + $0xbc] sm:$0xf]
    %v77 = vld [vmem:[#allocation2 + $0xc0] sm:$0xf]
    %v78 = vld [vmem:[#allocation2 + $0xc4] sm:$0xf]
    %v79 = vld [vmem:[#allocation2 + $0xc8] sm:$0xf]
    %v80 = vld [vmem:[#allocation2 + $0xcc] sm:$0xf]
    %v81 = vld [vmem:[#allocation2 + $0xd0] sm:$0xf]
    %v82 = vld [vmem:[#allocation2 + $0xd4] sm:$0xf]
    %v83 = vld [vmem:[#allocation2 + $0xd8] sm:$0xf]
    %v84 = vld [vmem:[#allocation2 + $0xdc] sm:$0xf]
    %v85 = vld [vmem:[#allocation2 + $0xe0] sm:$0xf]
    %v86 = vld [vmem:[#allocation2 + $0xe4] sm:$0xf]
    %v87 = vld [vmem:[#allocation2 + $0xe8] sm:$0xf]
    %v88 = vld [vmem:[#allocation2 + $0xec] sm:$0xf]
    %v89 = vld [vmem:[#allocation2 + $0xf0] sm:$0xf]
    %v90 = vld [vmem:[#allocation2 + $0xf4] sm:$0xf]
    %v91 = vld [vmem:[#allocation2 + $0xf8] sm:$0xf]
    %v92 = vld [vmem:[#allocation2 + $0xfc] sm:$0xf]
    %v93 = vld [vmem:[%s1] sm:$0xf]
    %v94 = vld [vmem:[%s1 + $0x4] sm:$0xf]
    %v95 = vld [vmem:[%s1 + $0x8] sm:$0xf]
    %v96 = vld [vmem:[%s1 + $0xc] sm:$0xf]
    %v97 = vld [vmem:[%s1 + $0x10] sm:$0xf]
    %v98 = vld [vmem:[%s1 + $0x14] sm:$0xf]
    %v99 = vld [vmem:[%s1 + $0x18] sm:$0xf]
    %v100 = vld [vmem:[%s1 + $0x1c] sm:$0xf]
    %v101 = vld [vmem:[%s1 + $0x20] sm:$0xf]
    %v102 = vld [vmem:[%s1 + $0x24] sm:$0xf]
    %v103 = vld [vmem:[%s1 + $0x28] sm:$0xf]
    %v104 = vld [vmem:[%s1 + $0x2c] sm:$0xf]
    %v105 = vld [vmem:[%s1 + $0x30] sm:$0xf]
    %v106 = vld [vmem:[%s1 + $0x34] sm:$0xf]
    %v107 = vld [vmem:[%s1 + $0x38] sm:$0xf]
    %v108 = vld [vmem:[%s1 + $0x3c] sm:$0xf]
    %v109 = vld [vmem:[%s2] sm:$0x1]
    %v111 = vlaneseq
    %v112 = vshrl.u32 %v111, 7
    %v113 = vsub.s32 0, %v112
    %v114 = vrot.slane %v109, %v113
    %v180 = vunpack.c.l.b16 %v29
    %v181 = vunpack.c.l.b16 %v30
    %v182 = vunpack.c.l.b16 %v31
    %v183 = vunpack.c.l.b16 %v32
    %v184 = vunpack.c.l.b16 %v33
    %v185 = vunpack.c.l.b16 %v34
    %v186 = vunpack.c.l.b16 %v35
    %v187 = vunpack.c.l.b16 %v36
    %v188 = vunpack.c.l.b16 %v37
    %v189 = vunpack.c.l.b16 %v38
    %v190 = vunpack.c.l.b16 %v39
    %v191 = vunpack.c.l.b16 %v40
    %v192 = vunpack.c.l.b16 %v41
    %v193 = vunpack.c.l.b16 %v42
    %v194 = vunpack.c.l.b16 %v43
    %v195 = vunpack.c.l.b16 %v44
    %v196 = vunpack.c.l.b16 %v45
    %v197 = vunpack.c.l.b16 %v46
    %v198 = vunpack.c.l.b16 %v47
    %v199 = vunpack.c.l.b16 %v48
    %v200 = vunpack.c.l.b16 %v49
    %v201 = vunpack.c.l.b16 %v50
    %v202 = vunpack.c.l.b16 %v51
    %v203 = vunpack.c.l.b16 %v52
    %v204 = vunpack.c.l.b16 %v53
    %v205 = vunpack.c.l.b16 %v54
    %v206 = vunpack.c.l.b16 %v55
    %v207 = vunpack.c.l.b16 %v56
    %v208 = vunpack.c.l.b16 %v57
    %v209 = vunpack.c.l.b16 %v58
    %v210 = vunpack.c.l.b16 %v59
    %v211 = vunpack.c.l.b16 %v60
    %v212 = vunpack.c.l.b16 %v61
    %v213 = vunpack.c.l.b16 %v62
    %v214 = vunpack.c.l.b16 %v63
    %v215 = vunpack.c.l.b16 %v64
    %v216 = vunpack.c.l.b16 %v65
    %v217 = vunpack.c.l.b16 %v66
    %v218 = vunpack.c.l.b16 %v67
    %v219 = vunpack.c.l.b16 %v68
    %v220 = vunpack.c.l.b16 %v69
    %v221 = vunpack.c.l.b16 %v70
    %v222 = vunpack.c.l.b16 %v71
    %v223 = vunpack.c.l.b16 %v72
    %v224 = vunpack.c.l.b16 %v73
    %v225 = vunpack.c.l.b16 %v74
    %v226 = vunpack.c.l.b16 %v75
    %v227 = vunpack.c.l.b16 %v76
    %v228 = vunpack.c.l.b16 %v77
    %v229 = vunpack.c.l.b16 %v78
    %v230 = vunpack.c.l.b16 %v79
    %v231 = vunpack.c.l.b16 %v80
    %v232 = vunpack.c.l.b16 %v81
    %v233 = vunpack.c.l.b16 %v82
    %v234 = vunpack.c.l.b16 %v83
    %v235 = vunpack.c.l.b16 %v84
    %v236 = vunpack.c.l.b16 %v85
    %v237 = vunpack.c.l.b16 %v86
    %v238 = vunpack.c.l.b16 %v87
    %v239 = vunpack.c.l.b16 %v88
    %v240 = vunpack.c.l.b16 %v89
    %v241 = vunpack.c.l.b16 %v90
    %v242 = vunpack.c.l.b16 %v91
    %v243 = vunpack.c.l.b16 %v92
    %v244 = vpack.c.b16 %v181, %v180
    %v245 = vpack.c.b16 %v183, %v182
    %v246 = vpack.c.b16 %v185, %v184
    %v247 = vpack.c.b16 %v187, %v186
    %v248 = vpack.c.b16 %v189, %v188
    %v249 = vpack.c.b16 %v191, %v190
    %v250 = vpack.c.b16 %v193, %v192
    %v251 = vpack.c.b16 %v195, %v194
    %v252 = vpack.c.b16 %v197, %v196
    %v253 = vpack.c.b16 %v199, %v198
    %v254 = vpack.c.b16 %v201, %v200
    %v255 = vpack.c.b16 %v203, %v202
    %v256 = vpack.c.b16 %v205, %v204
    %v257 = vpack.c.b16 %v207, %v206
    %v258 = vpack.c.b16 %v209, %v208
    %v259 = vpack.c.b16 %v211, %v210
    %v260 = vpack.c.b16 %v213, %v212
    %v261 = vpack.c.b16 %v215, %v214
    %v262 = vpack.c.b16 %v217, %v216
    %v263 = vpack.c.b16 %v219, %v218
    %v264 = vpack.c.b16 %v221, %v220
    %v265 = vpack.c.b16 %v223, %v222
    %v266 = vpack.c.b16 %v225, %v224
    %v267 = vpack.c.b16 %v227, %v226
    %v268 = vpack.c.b16 %v229, %v228
    %v269 = vpack.c.b16 %v231, %v230
    %v270 = vpack.c.b16 %v233, %v232
    %v271 = vpack.c.b16 %v235, %v234
    %v272 = vpack.c.b16 %v237, %v236
    %v273 = vpack.c.b16 %v239, %v238
    %v274 = vpack.c.b16 %v241, %v240
    %v275 = vpack.c.b16 %v243, %v242
    %v324 = vunpack.c.l.b16 %v93
    %v325 = vunpack.c.l.b16 %v94
    %v326 = vunpack.c.l.b16 %v95
    %v327 = vunpack.c.l.b16 %v96
    %v328 = vunpack.c.l.b16 %v97
    %v329 = vunpack.c.l.b16 %v98
    %v330 = vunpack.c.l.b16 %v99
    %v331 = vunpack.c.l.b16 %v100
    %v332 = vunpack.c.l.b16 %v101
    %v333 = vunpack.c.l.b16 %v102
    %v334 = vunpack.c.l.b16 %v103
    %v335 = vunpack.c.l.b16 %v104
    %v336 = vunpack.c.l.b16 %v105
    %v337 = vunpack.c.l.b16 %v106
    %v338 = vunpack.c.l.b16 %v107
    %v339 = vunpack.c.l.b16 %v108
    %v340 = vpack.c.b16 %v325, %v324
    %v341 = vpack.c.b16 %v327, %v326
    %v342 = vpack.c.b16 %v329, %v328
    %v343 = vpack.c.b16 %v331, %v330
    %v344 = vpack.c.b16 %v333, %v332
    %v345 = vpack.c.b16 %v335, %v334
    %v346 = vpack.c.b16 %v337, %v336
    %v347 = vpack.c.b16 %v339, %v338
    %356 = vmatprep.subr.bf16.mxu0 0
    %357 = vmatpush1.bf16.msra.mxu0 %v347
    %358 = vmatprep.subr.bf16.mxu0 0
    %359 = vmatpush1.bf16.msra.mxu0 %v346
    %360 = vmatprep.subr.bf16.mxu0 0
    %361 = vmatpush1.bf16.msra.mxu0 %v345
    %362 = vmatprep.subr.bf16.mxu0 0
    %363 = vmatpush1.bf16.msra.mxu0 %v344
    %364 = vmatprep.subr.bf16.mxu0 0
    %365 = vmatpush1.bf16.msra.mxu0 %v343
    %366 = vmatprep.subr.bf16.mxu0 0
    %367 = vmatpush1.bf16.msra.mxu0 %v342
    %368 = vmatprep.subr.bf16.mxu0 0
    %369 = vmatpush1.bf16.msra.mxu0 %v341
    %370 = vmatprep.subr.bf16.mxu0 0
    %371 = vmatpush1.bf16.msra.mxu0 %v340
    %372 = vmatprep.subr.bf16.mxu0 0
    %373 = vmatpush2.bf16.msra.mxu0 0
    %374 = vmatprep.subr.bf16.mxu0 0
    %375 = vmatpush2.bf16.msra.mxu0 0
    %376 = vmatprep.subr.bf16.mxu0 0
    %377 = vmatpush2.bf16.msra.mxu0 0
    %378 = vmatprep.subr.bf16.mxu0 0
    %379 = vmatpush2.bf16.msra.mxu0 0
    %380 = vmatprep.subr.bf16.mxu0 0
    %381 = vmatpush2.bf16.msra.mxu0 0
    %382 = vmatprep.subr.bf16.mxu0 0
    %383 = vmatpush2.bf16.msra.mxu0 0
    %384 = vmatprep.subr.bf16.mxu0 0
    %385 = vmatpush2.bf16.msra.mxu0 0
    %386 = vmatprep.subr.bf16.mxu0 0
    %387 = vmatpush2.bf16.msra.mxu0 0
    %388 = vmatprep.mubr.bf16.mxu0 0
    %389 = vmatmul.mubr.bf16.gmra.mxu0 %v244
    %v390 = vpop.f32.mrf.mxu0
    %v391 = vadd.f32 %v114, %v390
    %v392 = vpop.f32.mrf.mxu0
    %v393 = vpop.f32.mrf.mxu0
    %v394 = vadd.f32 %v114, %v393
    %v395 = vpop.f32.mrf.mxu0
    %396 = vmatprep.mubr.bf16.mxu0 0
    %397 = vmatmul.mubr.bf16.gmra.mxu0 %v245
    %v398 = vpop.f32.mrf.mxu0
    %v399 = vadd.f32 %v114, %v398
    %v400 = vpop.f32.mrf.mxu0
    %v401 = vpop.f32.mrf.mxu0
    %v402 = vadd.f32 %v114, %v401
    %v403 = vpop.f32.mrf.mxu0
    %404 = vmatprep.mubr.bf16.mxu0 0
    %405 = vmatmul.mubr.bf16.gmra.mxu0 %v246
    %v406 = vpop.f32.mrf.mxu0
    %v407 = vadd.f32 %v114, %v406
    %v408 = vpop.f32.mrf.mxu0
    %v409 = vpop.f32.mrf.mxu0
    %v410 = vadd.f32 %v114, %v409
    %v411 = vpop.f32.mrf.mxu0
    %412 = vmatprep.mubr.bf16.mxu0 0
    %413 = vmatmul.mubr.bf16.gmra.mxu0 %v247
    %v414 = vpop.f32.mrf.mxu0
    %v415 = vadd.f32 %v114, %v414
    %v416 = vpop.f32.mrf.mxu0
    %v417 = vpop.f32.mrf.mxu0
    %v418 = vadd.f32 %v114, %v417
    %v419 = vpop.f32.mrf.mxu0
    %420 = vmatprep.mubr.bf16.mxu0 0
    %421 = vmatmul.mubr.bf16.gmra.mxu0 %v248
    %v422 = vpop.f32.mrf.mxu0
    %v423 = vadd.f32 %v114, %v422
    %v424 = vpop.f32.mrf.mxu0
    %v425 = vpop.f32.mrf.mxu0
    %v426 = vadd.f32 %v114, %v425
    %v427 = vpop.f32.mrf.mxu0
    %428 = vmatprep.mubr.bf16.mxu0 0
    %429 = vmatmul.mubr.bf16.gmra.mxu0 %v249
    %v430 = vpop.f32.mrf.mxu0
    %v431 = vadd.f32 %v114, %v430
    %v432 = vpop.f32.mrf.mxu0
    %v433 = vpop.f32.mrf.mxu0
    %v434 = vadd.f32 %v114, %v433
    %v435 = vpop.f32.mrf.mxu0
    %436 = vmatprep.mubr.bf16.mxu0 0
    %437 = vmatmul.mubr.bf16.gmra.mxu0 %v250
    %v438 = vpop.f32.mrf.mxu0
    %v439 = vadd.f32 %v114, %v438
    %v440 = vpop.f32.mrf.mxu0
    %v441 = vpop.f32.mrf.mxu0
    %v442 = vadd.f32 %v114, %v441
    %v443 = vpop.f32.mrf.mxu0
    %444 = vmatprep.mubr.bf16.mxu0 0
    %445 = vmatmul.mubr.bf16.gmra.mxu0 %v251
    %v446 = vpop.f32.mrf.mxu0
    %v447 = vadd.f32 %v114, %v446
    %v448 = vpop.f32.mrf.mxu0
    %v449 = vpop.f32.mrf.mxu0
    %v450 = vadd.f32 %v114, %v449
    %v451 = vpop.f32.mrf.mxu0
    %452 = vmatprep.mubr.bf16.mxu0 0
    %453 = vmatmul.mubr.bf16.gmra.mxu0 %v252
    %v454 = vpop.f32.mrf.mxu0
    %v455 = vadd.f32 %v114, %v454
    %v456 = vpop.f32.mrf.mxu0
    %v457 = vpop.f32.mrf.mxu0
    %v458 = vadd.f32 %v114, %v457
    %v459 = vpop.f32.mrf.mxu0
    %460 = vmatprep.mubr.bf16.mxu0 0
    %461 = vmatmul.mubr.bf16.gmra.mxu0 %v253
    %v462 = vpop.f32.mrf.mxu0
    %v463 = vadd.f32 %v114, %v462
    %v464 = vpop.f32.mrf.mxu0
    %v465 = vpop.f32.mrf.mxu0
    %v466 = vadd.f32 %v114, %v465
    %v467 = vpop.f32.mrf.mxu0
    %468 = vmatprep.mubr.bf16.mxu0 0
    %469 = vmatmul.mubr.bf16.gmra.mxu0 %v254
    %v470 = vpop.f32.mrf.mxu0
    %v471 = vadd.f32 %v114, %v470
    %v472 = vpop.f32.mrf.mxu0
    %v473 = vpop.f32.mrf.mxu0
    %v474 = vadd.f32 %v114, %v473
    %v475 = vpop.f32.mrf.mxu0
    %476 = vmatprep.mubr.bf16.mxu0 0
    %477 = vmatmul.mubr.bf16.gmra.mxu0 %v255
    %v478 = vpop.f32.mrf.mxu0
    %v479 = vadd.f32 %v114, %v478
    %v480 = vpop.f32.mrf.mxu0
    %v481 = vpop.f32.mrf.mxu0
    %v482 = vadd.f32 %v114, %v481
    %v483 = vpop.f32.mrf.mxu0
    %484 = vmatprep.mubr.bf16.mxu0 0
    %485 = vmatmul.mubr.bf16.gmra.mxu0 %v256
    %v486 = vpop.f32.mrf.mxu0
    %v487 = vadd.f32 %v114, %v486
    %v488 = vpop.f32.mrf.mxu0
    %v489 = vpop.f32.mrf.mxu0
    %v490 = vadd.f32 %v114, %v489
    %v491 = vpop.f32.mrf.mxu0
    %492 = vmatprep.mubr.bf16.mxu0 0
    %493 = vmatmul.mubr.bf16.gmra.mxu0 %v257
    %v494 = vpop.f32.mrf.mxu0
    %v495 = vadd.f32 %v114, %v494
    %v496 = vpop.f32.mrf.mxu0
    %v497 = vpop.f32.mrf.mxu0
    %v498 = vadd.f32 %v114, %v497
    %v499 = vpop.f32.mrf.mxu0
    %500 = vmatprep.mubr.bf16.mxu0 0
    %501 = vmatmul.mubr.bf16.gmra.mxu0 %v258
    %v502 = vpop.f32.mrf.mxu0
    %v503 = vadd.f32 %v114, %v502
    %v504 = vpop.f32.mrf.mxu0
    %v505 = vpop.f32.mrf.mxu0
    %v506 = vadd.f32 %v114, %v505
    %v507 = vpop.f32.mrf.mxu0
    %508 = vmatprep.mubr.bf16.mxu0 0
    %509 = vmatmul.mubr.bf16.gmra.mxu0 %v259
    %v510 = vpop.f32.mrf.mxu0
    %v511 = vadd.f32 %v114, %v510
    %v512 = vpop.f32.mrf.mxu0
    %v513 = vpop.f32.mrf.mxu0
    %v514 = vadd.f32 %v114, %v513
    %v515 = vpop.f32.mrf.mxu0
    %516 = vmatprep.mubr.bf16.mxu0 0
    %517 = vmatmul.mubr.bf16.gmra.mxu0 %v260
    %v518 = vpop.f32.mrf.mxu0
    %v519 = vadd.f32 %v114, %v518
    %v520 = vpop.f32.mrf.mxu0
    %v521 = vpop.f32.mrf.mxu0
    %v522 = vadd.f32 %v114, %v521
    %v523 = vpop.f32.mrf.mxu0
    %524 = vmatprep.mubr.bf16.mxu0 0
    %525 = vmatmul.mubr.bf16.gmra.mxu0 %v261
    %v526 = vpop.f32.mrf.mxu0
    %v527 = vadd.f32 %v114, %v526
    %v528 = vpop.f32.mrf.mxu0
    %v529 = vpop.f32.mrf.mxu0
    %v530 = vadd.f32 %v114, %v529
    %v531 = vpop.f32.mrf.mxu0
    %532 = vmatprep.mubr.bf16.mxu0 0
    %533 = vmatmul.mubr.bf16.gmra.mxu0 %v262
    %v534 = vpop.f32.mrf.mxu0
    %v535 = vadd.f32 %v114, %v534
    %v536 = vpop.f32.mrf.mxu0
    %v537 = vpop.f32.mrf.mxu0
    %v538 = vadd.f32 %v114, %v537
    %v539 = vpop.f32.mrf.mxu0
    %540 = vmatprep.mubr.bf16.mxu0 0
    %541 = vmatmul.mubr.bf16.gmra.mxu0 %v263
    %v542 = vpop.f32.mrf.mxu0
    %v543 = vadd.f32 %v114, %v542
    %v544 = vpop.f32.mrf.mxu0
    %v545 = vpop.f32.mrf.mxu0
    %v546 = vadd.f32 %v114, %v545
    %v547 = vpop.f32.mrf.mxu0
    %548 = vmatprep.mubr.bf16.mxu0 0
    %549 = vmatmul.mubr.bf16.gmra.mxu0 %v264
    %v550 = vpop.f32.mrf.mxu0
    %v551 = vadd.f32 %v114, %v550
    %v552 = vpop.f32.mrf.mxu0
    %v553 = vpop.f32.mrf.mxu0
    %v554 = vadd.f32 %v114, %v553
    %v555 = vpop.f32.mrf.mxu0
    %556 = vmatprep.mubr.bf16.mxu0 0
    %557 = vmatmul.mubr.bf16.gmra.mxu0 %v265
    %v558 = vpop.f32.mrf.mxu0
    %v559 = vadd.f32 %v114, %v558
    %v560 = vpop.f32.mrf.mxu0
    %v561 = vpop.f32.mrf.mxu0
    %v562 = vadd.f32 %v114, %v561
    %v563 = vpop.f32.mrf.mxu0
    %564 = vmatprep.mubr.bf16.mxu0 0
    %565 = vmatmul.mubr.bf16.gmra.mxu0 %v266
    %v566 = vpop.f32.mrf.mxu0
    %v567 = vadd.f32 %v114, %v566
    %v568 = vpop.f32.mrf.mxu0
    %v569 = vpop.f32.mrf.mxu0
    %v570 = vadd.f32 %v114, %v569
    %v571 = vpop.f32.mrf.mxu0
    %572 = vmatprep.mubr.bf16.mxu0 0
    %573 = vmatmul.mubr.bf16.gmra.mxu0 %v267
    %v574 = vpop.f32.mrf.mxu0
    %v575 = vadd.f32 %v114, %v574
    %v576 = vpop.f32.mrf.mxu0
    %v577 = vpop.f32.mrf.mxu0
    %v578 = vadd.f32 %v114, %v577
    %v579 = vpop.f32.mrf.mxu0
    %580 = vmatprep.mubr.bf16.mxu0 0
    %581 = vmatmul.mubr.bf16.gmra.mxu0 %v268
    %v582 = vpop.f32.mrf.mxu0
    %v583 = vadd.f32 %v114, %v582
    %v584 = vpop.f32.mrf.mxu0
    %v585 = vpop.f32.mrf.mxu0
    %v586 = vadd.f32 %v114, %v585
    %v587 = vpop.f32.mrf.mxu0
    %588 = vmatprep.mubr.bf16.mxu0 0
    %589 = vmatmul.mubr.bf16.gmra.mxu0 %v269
    %v590 = vpop.f32.mrf.mxu0
    %v591 = vadd.f32 %v114, %v590
    %v592 = vpop.f32.mrf.mxu0
    %v593 = vpop.f32.mrf.mxu0
    %v594 = vadd.f32 %v114, %v593
    %v595 = vpop.f32.mrf.mxu0
    %596 = vmatprep.mubr.bf16.mxu0 0
    %597 = vmatmul.mubr.bf16.gmra.mxu0 %v270
    %v598 = vpop.f32.mrf.mxu0
    %v599 = vadd.f32 %v114, %v598
    %v600 = vpop.f32.mrf.mxu0
    %v601 = vpop.f32.mrf.mxu0
    %v602 = vadd.f32 %v114, %v601
    %v603 = vpop.f32.mrf.mxu0
    %604 = vmatprep.mubr.bf16.mxu0 0
    %605 = vmatmul.mubr.bf16.gmra.mxu0 %v271
    %v606 = vpop.f32.mrf.mxu0
    %v607 = vadd.f32 %v114, %v606
    %v608 = vpop.f32.mrf.mxu0
    %v609 = vpop.f32.mrf.mxu0
    %v610 = vadd.f32 %v114, %v609
    %v611 = vpop.f32.mrf.mxu0
    %612 = vmatprep.mubr.bf16.mxu0 0
    %613 = vmatmul.mubr.bf16.gmra.mxu0 %v272
    %v614 = vpop.f32.mrf.mxu0
    %v615 = vadd.f32 %v114, %v614
    %v616 = vpop.f32.mrf.mxu0
    %v617 = vpop.f32.mrf.mxu0
    %v618 = vadd.f32 %v114, %v617
    %v619 = vpop.f32.mrf.mxu0
    %620 = vmatprep.mubr.bf16.mxu0 0
    %621 = vmatmul.mubr.bf16.gmra.mxu0 %v273
    %v622 = vpop.f32.mrf.mxu0
    %v623 = vadd.f32 %v114, %v622
    %v624 = vpop.f32.mrf.mxu0
    %v625 = vpop.f32.mrf.mxu0
    %v626 = vadd.f32 %v114, %v625
    %v627 = vpop.f32.mrf.mxu0
    %628 = vmatprep.mubr.bf16.mxu0 0
    %629 = vmatmul.mubr.bf16.gmra.mxu0 %v274
    %v630 = vpop.f32.mrf.mxu0
    %v631 = vadd.f32 %v114, %v630
    %v632 = vpop.f32.mrf.mxu0
    %v633 = vpop.f32.mrf.mxu0
    %v634 = vadd.f32 %v114, %v633
    %v635 = vpop.f32.mrf.mxu0
    %636 = vmatprep.mubr.bf16.mxu0 0
    %637 = vmatmul.mubr.bf16.gmra.mxu0 %v275
    %v638 = vpop.f32.mrf.mxu0
    %v639 = vadd.f32 %v114, %v638
    %v640 = vpop.f32.mrf.mxu0
    %v641 = vpop.f32.mrf.mxu0
    %v642 = vadd.f32 %v114, %v641
    %v643 = vpop.f32.mrf.mxu0
    %644 = vdwg.mxu0
    %vm645 = vcmp.ge.f32.partialorder %v391, 0.0
    %vm646 = vcmp.ge.f32.partialorder %v394, 0.0
    %vm647 = vcmp.ge.f32.partialorder %v399, 0.0
    %vm648 = vcmp.ge.f32.partialorder %v402, 0.0
    %vm649 = vcmp.ge.f32.partialorder %v407, 0.0
    %vm650 = vcmp.ge.f32.partialorder %v410, 0.0
    %vm651 = vcmp.ge.f32.partialorder %v415, 0.0
    %vm652 = vcmp.ge.f32.partialorder %v418, 0.0
    %vm653 = vcmp.ge.f32.partialorder %v423, 0.0
    %vm654 = vcmp.ge.f32.partialorder %v426, 0.0
    %vm655 = vcmp.ge.f32.partialorder %v431, 0.0
    %vm656 = vcmp.ge.f32.partialorder %v434, 0.0
    %vm657 = vcmp.ge.f32.partialorder %v439, 0.0
    %vm658 = vcmp.ge.f32.partialorder %v442, 0.0
    %vm659 = vcmp.ge.f32.partialorder %v447, 0.0
    %vm660 = vcmp.ge.f32.partialorder %v450, 0.0
    %vm661 = vcmp.ge.f32.partialorder %v455, 0.0
    %vm662 = vcmp.ge.f32.partialorder %v458, 0.0
    %vm663 = vcmp.ge.f32.partialorder %v463, 0.0
    %vm664 = vcmp.ge.f32.partialorder %v466, 0.0
    %vm665 = vcmp.ge.f32.partialorder %v471, 0.0
    %vm666 = vcmp.ge.f32.partialorder %v474, 0.0
    %vm667 = vcmp.ge.f32.partialorder %v479, 0.0
    %vm668 = vcmp.ge.f32.partialorder %v482, 0.0
    %vm669 = vcmp.ge.f32.partialorder %v487, 0.0
    %vm670 = vcmp.ge.f32.partialorder %v490, 0.0
    %vm671 = vcmp.ge.f32.partialorder %v495, 0.0
    %vm672 = vcmp.ge.f32.partialorder %v498, 0.0
    %vm673 = vcmp.ge.f32.partialorder %v503, 0.0
    %vm674 = vcmp.ge.f32.partialorder %v506, 0.0
    %vm675 = vcmp.ge.f32.partialorder %v511, 0.0
    %vm676 = vcmp.ge.f32.partialorder %v514, 0.0
    %vm677 = vcmp.ge.f32.partialorder %v519, 0.0
    %vm678 = vcmp.ge.f32.partialorder %v522, 0.0
    %vm679 = vcmp.ge.f32.partialorder %v527, 0.0
    %vm680 = vcmp.ge.f32.partialorder %v530, 0.0
    %vm681 = vcmp.ge.f32.partialorder %v535, 0.0
    %vm682 = vcmp.ge.f32.partialorder %v538, 0.0
    %vm683 = vcmp.ge.f32.partialorder %v543, 0.0
    %vm684 = vcmp.ge.f32.partialorder %v546, 0.0
    %vm685 = vcmp.ge.f32.partialorder %v551, 0.0
    %vm686 = vcmp.ge.f32.partialorder %v554, 0.0
    %vm687 = vcmp.ge.f32.partialorder %v559, 0.0
    %vm688 = vcmp.ge.f32.partialorder %v562, 0.0
    %vm689 = vcmp.ge.f32.partialorder %v567, 0.0
    %vm690 = vcmp.ge.f32.partialorder %v570, 0.0
    %vm691 = vcmp.ge.f32.partialorder %v575, 0.0
    %vm692 = vcmp.ge.f32.partialorder %v578, 0.0
    %vm693 = vcmp.ge.f32.partialorder %v583, 0.0
    %vm694 = vcmp.ge.f32.partialorder %v586, 0.0
    %vm695 = vcmp.ge.f32.partialorder %v591, 0.0
    %vm696 = vcmp.ge.f32.partialorder %v594, 0.0
    %vm697 = vcmp.ge.f32.partialorder %v599, 0.0
    %vm698 = vcmp.ge.f32.partialorder %v602, 0.0
    %vm699 = vcmp.ge.f32.partialorder %v607, 0.0
    %vm700 = vcmp.ge.f32.partialorder %v610, 0.0
    %vm701 = vcmp.ge.f32.partialorder %v615, 0.0
    %vm702 = vcmp.ge.f32.partialorder %v618, 0.0
    %vm703 = vcmp.ge.f32.partialorder %v623, 0.0
    %vm704 = vcmp.ge.f32.partialorder %v626, 0.0
    %vm705 = vcmp.ge.f32.partialorder %v631, 0.0
    %vm706 = vcmp.ge.f32.partialorder %v634, 0.0
    %vm707 = vcmp.ge.f32.partialorder %v639, 0.0
    %vm708 = vcmp.ge.f32.partialorder %v642, 0.0
    %v709 = vmul.f32 %v391, 0.2
    %v710 = vmul.f32 %v394, 0.2
    %v711 = vmul.f32 %v399, 0.2
    %v712 = vmul.f32 %v402, 0.2
    %v713 = vmul.f32 %v407, 0.2
    %v714 = vmul.f32 %v410, 0.2
    %v715 = vmul.f32 %v415, 0.2
    %v716 = vmul.f32 %v418, 0.2
    %v717 = vmul.f32 %v423, 0.2
    %v718 = vmul.f32 %v426, 0.2
    %v719 = vmul.f32 %v431, 0.2
    %v720 = vmul.f32 %v434, 0.2
    %v721 = vmul.f32 %v439, 0.2
    %v722 = vmul.f32 %v442, 0.2
    %v723 = vmul.f32 %v447, 0.2
    %v724 = vmul.f32 %v450, 0.2
    %v725 = vmul.f32 %v455, 0.2
    %v726 = vmul.f32 %v458, 0.2
    %v727 = vmul.f32 %v463, 0.2
    %v728 = vmul.f32 %v466, 0.2
    %v729 = vmul.f32 %v471, 0.2
    %v730 = vmul.f32 %v474, 0.2
    %v731 = vmul.f32 %v479, 0.2
    %v732 = vmul.f32 %v482, 0.2
    %v733 = vmul.f32 %v487, 0.2
    %v734 = vmul.f32 %v490, 0.2
    %v735 = vmul.f32 %v495, 0.2
    %v736 = vmul.f32 %v498, 0.2
    %v737 = vmul.f32 %v503, 0.2
    %v738 = vmul.f32 %v506, 0.2
    %v739 = vmul.f32 %v511, 0.2
    %v740 = vmul.f32 %v514, 0.2
    %v741 = vmul.f32 %v519, 0.2
    %v742 = vmul.f32 %v522, 0.2
    %v743 = vmul.f32 %v527, 0.2
    %v744 = vmul.f32 %v530, 0.2
    %v745 = vmul.f32 %v535, 0.2
    %v746 = vmul.f32 %v538, 0.2
    %v747 = vmul.f32 %v543, 0.2
    %v748 = vmul.f32 %v546, 0.2
    %v749 = vmul.f32 %v551, 0.2
    %v750 = vmul.f32 %v554, 0.2
    %v751 = vmul.f32 %v559, 0.2
    %v752 = vmul.f32 %v562, 0.2
    %v753 = vmul.f32 %v567, 0.2
    %v754 = vmul.f32 %v570, 0.2
    %v755 = vmul.f32 %v575, 0.2
    %v756 = vmul.f32 %v578, 0.2
    %v757 = vmul.f32 %v583, 0.2
    %v758 = vmul.f32 %v586, 0.2
    %v759 = vmul.f32 %v591, 0.2
    %v760 = vmul.f32 %v594, 0.2
    %v761 = vmul.f32 %v599, 0.2
    %v762 = vmul.f32 %v602, 0.2
    %v763 = vmul.f32 %v607, 0.2
    %v764 = vmul.f32 %v610, 0.2
    %v765 = vmul.f32 %v615, 0.2
    %v766 = vmul.f32 %v618, 0.2
    %v767 = vmul.f32 %v623, 0.2
    %v768 = vmul.f32 %v626, 0.2
    %v769 = vmul.f32 %v631, 0.2
    %v770 = vmul.f32 %v634, 0.2
    %v771 = vmul.f32 %v639, 0.2
    %v772 = vmul.f32 %v642, 0.2
    %v773 = vsel %vm645, %v391, %v709
    %v774 = vsel %vm646, %v394, %v710
    %v775 = vsel %vm647, %v399, %v711
    %v776 = vsel %vm648, %v402, %v712
    %v777 = vsel %vm649, %v407, %v713
    %v778 = vsel %vm650, %v410, %v714
    %v779 = vsel %vm651, %v415, %v715
    %v780 = vsel %vm652, %v418, %v716
    %v781 = vsel %vm653, %v423, %v717
    %v782 = vsel %vm654, %v426, %v718
    %v783 = vsel %vm655, %v431, %v719
    %v784 = vsel %vm656, %v434, %v720
    %v785 = vsel %vm657, %v439, %v721
    %v786 = vsel %vm658, %v442, %v722
    %v787 = vsel %vm659, %v447, %v723
    %v788 = vsel %vm660, %v450, %v724
    %v789 = vsel %vm661, %v455, %v725
    %v790 = vsel %vm662, %v458, %v726
    %v791 = vsel %vm663, %v463, %v727
    %v792 = vsel %vm664, %v466, %v728
    %v793 = vsel %vm665, %v471, %v729
    %v794 = vsel %vm666, %v474, %v730
    %v795 = vsel %vm667, %v479, %v731
    %v796 = vsel %vm668, %v482, %v732
    %v797 = vsel %vm669, %v487, %v733
    %v798 = vsel %vm670, %v490, %v734
    %v799 = vsel %vm671, %v495, %v735
    %v800 = vsel %vm672, %v498, %v736
    %v801 = vsel %vm673, %v503, %v737
    %v802 = vsel %vm674, %v506, %v738
    %v803 = vsel %vm675, %v511, %v739
    %v804 = vsel %vm676, %v514, %v740
    %v805 = vsel %vm677, %v519, %v741
    %v806 = vsel %vm678, %v522, %v742
    %v807 = vsel %vm679, %v527, %v743
    %v808 = vsel %vm680, %v530, %v744
    %v809 = vsel %vm681, %v535, %v745
    %v810 = vsel %vm682, %v538, %v746
    %v811 = vsel %vm683, %v543, %v747
    %v812 = vsel %vm684, %v546, %v748
    %v813 = vsel %vm685, %v551, %v749
    %v814 = vsel %vm686, %v554, %v750
    %v815 = vsel %vm687, %v559, %v751
    %v816 = vsel %vm688, %v562, %v752
    %v817 = vsel %vm689, %v567, %v753
    %v818 = vsel %vm690, %v570, %v754
    %v819 = vsel %vm691, %v575, %v755
    %v820 = vsel %vm692, %v578, %v756
    %v821 = vsel %vm693, %v583, %v757
    %v822 = vsel %vm694, %v586, %v758
    %v823 = vsel %vm695, %v591, %v759
    %v824 = vsel %vm696, %v594, %v760
    %v825 = vsel %vm697, %v599, %v761
    %v826 = vsel %vm698, %v602, %v762
    %v827 = vsel %vm699, %v607, %v763
    %v828 = vsel %vm700, %v610, %v764
    %v829 = vsel %vm701, %v615, %v765
    %v830 = vsel %vm702, %v618, %v766
    %v831 = vsel %vm703, %v623, %v767
    %v832 = vsel %vm704, %v626, %v768
    %v833 = vsel %vm705, %v631, %v769
    %v834 = vsel %vm706, %v634, %v770
    %v835 = vsel %vm707, %v639, %v771
    %v836 = vsel %vm708, %v642, %v772
    %v837 = vpack.c.bf16 %v774, %v773
    %v838 = vpack.c.bf16 %v776, %v775
    %v839 = vpack.c.bf16 %v778, %v777
    %v840 = vpack.c.bf16 %v780, %v779
    %v841 = vpack.c.bf16 %v782, %v781
    %v842 = vpack.c.bf16 %v784, %v783
    %v843 = vpack.c.bf16 %v786, %v785
    %v844 = vpack.c.bf16 %v788, %v787
    %v845 = vpack.c.bf16 %v790, %v789
    %v846 = vpack.c.bf16 %v792, %v791
    %v847 = vpack.c.bf16 %v794, %v793
    %v848 = vpack.c.bf16 %v796, %v795
    %v849 = vpack.c.bf16 %v798, %v797
    %v850 = vpack.c.bf16 %v800, %v799
    %v851 = vpack.c.bf16 %v802, %v801
    %v852 = vpack.c.bf16 %v804, %v803
    %v853 = vpack.c.bf16 %v806, %v805
    %v854 = vpack.c.bf16 %v808, %v807
    %v855 = vpack.c.bf16 %v810, %v809
    %v856 = vpack.c.bf16 %v812, %v811
    %v857 = vpack.c.bf16 %v814, %v813
    %v858 = vpack.c.bf16 %v816, %v815
    %v859 = vpack.c.bf16 %v818, %v817
    %v860 = vpack.c.bf16 %v820, %v819
    %v861 = vpack.c.bf16 %v822, %v821
    %v862 = vpack.c.bf16 %v824, %v823
    %v863 = vpack.c.bf16 %v826, %v825
    %v864 = vpack.c.bf16 %v828, %v827
    %v865 = vpack.c.bf16 %v830, %v829
    %v866 = vpack.c.bf16 %v832, %v831
    %v867 = vpack.c.bf16 %v834, %v833
    %v868 = vpack.c.bf16 %v836, %v835
    %v901 = vunpack.c.l.b16 %v837
    %v902 = vunpack.c.h.b16 %v837
    %v903 = vunpack.c.l.b16 %v838
    %v904 = vunpack.c.h.b16 %v838
    %v905 = vunpack.c.l.b16 %v839
    %v906 = vunpack.c.h.b16 %v839
    %v907 = vunpack.c.l.b16 %v840
    %v908 = vunpack.c.h.b16 %v840
    %v909 = vunpack.c.l.b16 %v841
    %v910 = vunpack.c.h.b16 %v841
    %v911 = vunpack.c.l.b16 %v842
    %v912 = vunpack.c.h.b16 %v842
    %v913 = vunpack.c.l.b16 %v843
    %v914 = vunpack.c.h.b16 %v843
    %v915 = vunpack.c.l.b16 %v844
    %v916 = vunpack.c.h.b16 %v844
    %v917 = vunpack.c.l.b16 %v845
    %v918 = vunpack.c.h.b16 %v845
    %v919 = vunpack.c.l.b16 %v846
    %v920 = vunpack.c.h.b16 %v846
    %v921 = vunpack.c.l.b16 %v847
    %v922 = vunpack.c.h.b16 %v847
    %v923 = vunpack.c.l.b16 %v848
    %v924 = vunpack.c.h.b16 %v848
    %v925 = vunpack.c.l.b16 %v849
    %v926 = vunpack.c.h.b16 %v849
    %v927 = vunpack.c.l.b16 %v850
    %v928 = vunpack.c.h.b16 %v850
    %v929 = vunpack.c.l.b16 %v851
    %v930 = vunpack.c.h.b16 %v851
    %v931 = vunpack.c.l.b16 %v852
    %v932 = vunpack.c.h.b16 %v852
    %v933 = vunpack.c.l.b16 %v853
    %v934 = vunpack.c.h.b16 %v853
    %v935 = vunpack.c.l.b16 %v854
    %v936 = vunpack.c.h.b16 %v854
    %v937 = vunpack.c.l.b16 %v855
    %v938 = vunpack.c.h.b16 %v855
    %v939 = vunpack.c.l.b16 %v856
    %v940 = vunpack.c.h.b16 %v856
    %v941 = vunpack.c.l.b16 %v857
    %v942 = vunpack.c.h.b16 %v857
    %v943 = vunpack.c.l.b16 %v858
    %v944 = vunpack.c.h.b16 %v858
    %v945 = vunpack.c.l.b16 %v859
    %v946 = vunpack.c.h.b16 %v859
    %v947 = vunpack.c.l.b16 %v860
    %v948 = vunpack.c.h.b16 %v860
    %v949 = vunpack.c.l.b16 %v861
    %v950 = vunpack.c.h.b16 %v861
    %v951 = vunpack.c.l.b16 %v862
    %v952 = vunpack.c.h.b16 %v862
    %v953 = vunpack.c.l.b16 %v863
    %v954 = vunpack.c.h.b16 %v863
    %v955 = vunpack.c.l.b16 %v864
    %v956 = vunpack.c.h.b16 %v864
    %v957 = vunpack.c.l.b16 %v865
    %v958 = vunpack.c.h.b16 %v865
    %v959 = vunpack.c.l.b16 %v866
    %v960 = vunpack.c.h.b16 %v866
    %v961 = vunpack.c.l.b16 %v867
    %v962 = vunpack.c.h.b16 %v867
    %v963 = vunpack.c.l.b16 %v868
    %v964 = vunpack.c.h.b16 %v868
    %v965 = vpack.c.b16 %v901, %v901
    %v966 = vpack.c.b16 %v902, %v902
    %v967 = vpack.c.b16 %v903, %v903
    %v968 = vpack.c.b16 %v904, %v904
    %v969 = vpack.c.b16 %v905, %v905
    %v970 = vpack.c.b16 %v906, %v906
    %v971 = vpack.c.b16 %v907, %v907
    %v972 = vpack.c.b16 %v908, %v908
    %v973 = vpack.c.b16 %v909, %v909
    %v974 = vpack.c.b16 %v910, %v910
    %v975 = vpack.c.b16 %v911, %v911
    %v976 = vpack.c.b16 %v912, %v912
    %v977 = vpack.c.b16 %v913, %v913
    %v978 = vpack.c.b16 %v914, %v914
    %v979 = vpack.c.b16 %v915, %v915
    %v980 = vpack.c.b16 %v916, %v916
    %v981 = vpack.c.b16 %v917, %v917
    %v982 = vpack.c.b16 %v918, %v918
    %v983 = vpack.c.b16 %v919, %v919
    %v984 = vpack.c.b16 %v920, %v920
    %v985 = vpack.c.b16 %v921, %v921
    %v986 = vpack.c.b16 %v922, %v922
    %v987 = vpack.c.b16 %v923, %v923
    %v988 = vpack.c.b16 %v924, %v924
    %v989 = vpack.c.b16 %v925, %v925
    %v990 = vpack.c.b16 %v926, %v926
    %v991 = vpack.c.b16 %v927, %v927
    %v992 = vpack.c.b16 %v928, %v928
    %v993 = vpack.c.b16 %v929, %v929
    %v994 = vpack.c.b16 %v930, %v930
    %v995 = vpack.c.b16 %v931, %v931
    %v996 = vpack.c.b16 %v932, %v932
    %v997 = vpack.c.b16 %v933, %v933
    %v998 = vpack.c.b16 %v934, %v934
    %v999 = vpack.c.b16 %v935, %v935
    %v1000 = vpack.c.b16 %v936, %v936
    %v1001 = vpack.c.b16 %v937, %v937
    %v1002 = vpack.c.b16 %v938, %v938
    %v1003 = vpack.c.b16 %v939, %v939
    %v1004 = vpack.c.b16 %v940, %v940
    %v1005 = vpack.c.b16 %v941, %v941
    %v1006 = vpack.c.b16 %v942, %v942
    %v1007 = vpack.c.b16 %v943, %v943
    %v1008 = vpack.c.b16 %v944, %v944
    %v1009 = vpack.c.b16 %v945, %v945
    %v1010 = vpack.c.b16 %v946, %v946
    %v1011 = vpack.c.b16 %v947, %v947
    %v1012 = vpack.c.b16 %v948, %v948
    %v1013 = vpack.c.b16 %v949, %v949
    %v1014 = vpack.c.b16 %v950, %v950
    %v1015 = vpack.c.b16 %v951, %v951
    %v1016 = vpack.c.b16 %v952, %v952
    %v1017 = vpack.c.b16 %v953, %v953
    %v1018 = vpack.c.b16 %v954, %v954
    %v1019 = vpack.c.b16 %v955, %v955
    %v1020 = vpack.c.b16 %v956, %v956
    %v1021 = vpack.c.b16 %v957, %v957
    %v1022 = vpack.c.b16 %v958, %v958
    %v1023 = vpack.c.b16 %v959, %v959
    %v1024 = vpack.c.b16 %v960, %v960
    %v1025 = vpack.c.b16 %v961, %v961
    %v1026 = vpack.c.b16 %v962, %v962
    %v1027 = vpack.c.b16 %v963, %v963
    %v1028 = vpack.c.b16 %v964, %v964
    %vm1093 = vcmask 519168
    %1094 = vst.msk [vmem:[%s3] sm:$0xf] %vm1093, %v965
    %1095 = vst.msk [vmem:[%s3 + $0x4] sm:$0xf] %vm1093, %v966
    %1096 = vst.msk [vmem:[%s3 + $0x8] sm:$0xf] %vm1093, %v967
    %1097 = vst.msk [vmem:[%s3 + $0xc] sm:$0xf] %vm1093, %v968
    %1098 = vst.msk [vmem:[%s3 + $0x10] sm:$0xf] %vm1093, %v969
    %1099 = vst.msk [vmem:[%s3 + $0x14] sm:$0xf] %vm1093, %v970
    %1100 = vst.msk [vmem:[%s3 + $0x18] sm:$0xf] %vm1093, %v971
    %1101 = vst.msk [vmem:[%s3 + $0x1c] sm:$0xf] %vm1093, %v972
    %1102 = vst.msk [vmem:[%s3 + $0x20] sm:$0xf] %vm1093, %v973
    %1103 = vst.msk [vmem:[%s3 + $0x24] sm:$0xf] %vm1093, %v974
    %1104 = vst.msk [vmem:[%s3 + $0x28] sm:$0xf] %vm1093, %v975
    %1105 = vst.msk [vmem:[%s3 + $0x2c] sm:$0xf] %vm1093, %v976
    %1106 = vst.msk [vmem:[%s3 + $0x30] sm:$0xf] %vm1093, %v977
    %1107 = vst.msk [vmem:[%s3 + $0x34] sm:$0xf] %vm1093, %v978
    %1108 = vst.msk [vmem:[%s3 + $0x38] sm:$0xf] %vm1093, %v979
    %1109 = vst.msk [vmem:[%s3 + $0x3c] sm:$0xf] %vm1093, %v980
    %1110 = vst.msk [vmem:[%s3 + $0x40] sm:$0xf] %vm1093, %v981
    %1111 = vst.msk [vmem:[%s3 + $0x44] sm:$0xf] %vm1093, %v982
    %1112 = vst.msk [vmem:[%s3 + $0x48] sm:$0xf] %vm1093, %v983
    %1113 = vst.msk [vmem:[%s3 + $0x4c] sm:$0xf] %vm1093, %v984
    %1114 = vst.msk [vmem:[%s3 + $0x50] sm:$0xf] %vm1093, %v985
    %1115 = vst.msk [vmem:[%s3 + $0x54] sm:$0xf] %vm1093, %v986
    %1116 = vst.msk [vmem:[%s3 + $0x58] sm:$0xf] %vm1093, %v987
    %1117 = vst.msk [vmem:[%s3 + $0x5c] sm:$0xf] %vm1093, %v988
    %1118 = vst.msk [vmem:[%s3 + $0x60] sm:$0xf] %vm1093, %v989
    %1119 = vst.msk [vmem:[%s3 + $0x64] sm:$0xf] %vm1093, %v990
    %1120 = vst.msk [vmem:[%s3 + $0x68] sm:$0xf] %vm1093, %v991
    %1121 = vst.msk [vmem:[%s3 + $0x6c] sm:$0xf] %vm1093, %v992
    %1122 = vst.msk [vmem:[%s3 + $0x70] sm:$0xf] %vm1093, %v993
    %1123 = vst.msk [vmem:[%s3 + $0x74] sm:$0xf] %vm1093, %v994
    %1124 = vst.msk [vmem:[%s3 + $0x78] sm:$0xf] %vm1093, %v995
    %1125 = vst.msk [vmem:[%s3 + $0x7c] sm:$0xf] %vm1093, %v996
    %1126 = vst.msk [vmem:[%s3 + $0x80] sm:$0xf] %vm1093, %v997
    %1127 = vst.msk [vmem:[%s3 + $0x84] sm:$0xf] %vm1093, %v998
    %1128 = vst.msk [vmem:[%s3 + $0x88] sm:$0xf] %vm1093, %v999
    %1129 = vst.msk [vmem:[%s3 + $0x8c] sm:$0xf] %vm1093, %v1000
    %1130 = vst.msk [vmem:[%s3 + $0x90] sm:$0xf] %vm1093, %v1001
    %1131 = vst.msk [vmem:[%s3 + $0x94] sm:$0xf] %vm1093, %v1002
    %1132 = vst.msk [vmem:[%s3 + $0x98] sm:$0xf] %vm1093, %v1003
    %1133 = vst.msk [vmem:[%s3 + $0x9c] sm:$0xf] %vm1093, %v1004
    %1134 = vst.msk [vmem:[%s3 + $0xa0] sm:$0xf] %vm1093, %v1005
    %1135 = vst.msk [vmem:[%s3 + $0xa4] sm:$0xf] %vm1093, %v1006
    %1136 = vst.msk [vmem:[%s3 + $0xa8] sm:$0xf] %vm1093, %v1007
    %1137 = vst.msk [vmem:[%s3 + $0xac] sm:$0xf] %vm1093, %v1008
    %1138 = vst.msk [vmem:[%s3 + $0xb0] sm:$0xf] %vm1093, %v1009
    %1139 = vst.msk [vmem:[%s3 + $0xb4] sm:$0xf] %vm1093, %v1010
    %1140 = vst.msk [vmem:[%s3 + $0xb8] sm:$0xf] %vm1093, %v1011
    %1141 = vst.msk [vmem:[%s3 + $0xbc] sm:$0xf] %vm1093, %v1012
    %1142 = vst.msk [vmem:[%s3 + $0xc0] sm:$0xf] %vm1093, %v1013
    %1143 = vst.msk [vmem:[%s3 + $0xc4] sm:$0xf] %vm1093, %v1014
    %1144 = vst.msk [vmem:[%s3 + $0xc8] sm:$0xf] %vm1093, %v1015
    %1145 = vst.msk [vmem:[%s3 + $0xcc] sm:$0xf] %vm1093, %v1016
    %1146 = vst.msk [vmem:[%s3 + $0xd0] sm:$0xf] %vm1093, %v1017
    %1147 = vst.msk [vmem:[%s3 + $0xd4] sm:$0xf] %vm1093, %v1018
    %1148 = vst.msk [vmem:[%s3 + $0xd8] sm:$0xf] %vm1093, %v1019
    %1149 = vst.msk [vmem:[%s3 + $0xdc] sm:$0xf] %vm1093, %v1020
    %1150 = vst.msk [vmem:[%s3 + $0xe0] sm:$0xf] %vm1093, %v1021
    %1151 = vst.msk [vmem:[%s3 + $0xe4] sm:$0xf] %vm1093, %v1022
    %1152 = vst.msk [vmem:[%s3 + $0xe8] sm:$0xf] %vm1093, %v1023
    %1153 = vst.msk [vmem:[%s3 + $0xec] sm:$0xf] %vm1093, %v1024
    %1154 = vst.msk [vmem:[%s3 + $0xf0] sm:$0xf] %vm1093, %v1025
    %1155 = vst.msk [vmem:[%s3 + $0xf4] sm:$0xf] %vm1093, %v1026
    %1156 = vst.msk [vmem:[%s3 + $0xf8] sm:$0xf] %vm1093, %v1027
    %1157 = vst.msk [vmem:[%s3 + $0xfc] sm:$0xf] %vm1093, %v1028
    // Predicated region
    $region18: #{tpu_custom_call.1} parent=1 // pred_check
      _
    $region19: #{tpu_custom_call.1} parent=1 // pred_check_branch
      %1159 = sbr.rel (0) target = $region21
    $region20: #{tpu_custom_call.1} parent=1 // pred_region
      _
    $region21: #{tpu_custom_call.1} parent=1 // pred_fallthru
      _
    // Predicated region
    $region22: #{tpu_custom_call.1} parent=1 // pred_check
      _
    $region23: #{tpu_custom_call.1} parent=1 // pred_check_branch
      %1161 = sbr.rel (0) target = $region25
    $region24: #{tpu_custom_call.1} parent=1 // pred_region
      _
    $region25: #{tpu_custom_call.1} parent=1 // pred_fallthru
      _
    %1162 = vsyncpa [#allocation3], 1

</llo_original>
